<compile_context>
chip_gen: v7x
topology: tpu7x:2x2x1
jax: 0.10.0
libtpu: 0.0.40
codegen_flags: <defaults>
</compile_context>

<pallas_src>
import functools

import jax
import jax.numpy as jnp
from jax import lax
from jax.experimental import pallas as pl
from jax.experimental.pallas import tpu as pltpu

_NEG_INF = -1e30


def _round_up(x, m):
    return ((x + m - 1) // m) * m


def _pick_tile(dim, preferred):
    """Largest 128-aligned tile <= preferred that divides dim, else full dim."""
    if dim <= preferred:
        return dim
    for t in (preferred, 2048, 1024, 512, 256, 128):
        if t <= preferred and dim % t == 0:
            return t
    return dim


@functools.lru_cache(maxsize=None)
def _vmem_limit_bytes():
    """Per-generation VMEM budget: ~85% of physical capacity, leaving headroom for
    Mosaic internal scratch / semaphores / double-buffering.
    v5e/v6e (128 MiB) -> ~108 MiB; v7x (64 MiB) -> ~54 MiB.
    Conservative 64 MiB fallback if the hardware query is unavailable."""
    cap = None
    try:
        if hasattr(pltpu, "get_tpu_info"):
            cap = getattr(pltpu.get_tpu_info(), "vmem_capacity_bytes", None)
    except Exception:
        cap = None
    if not cap:
        return 64 * 1024 * 1024
    return int(int(cap) * 0.85)


# ---------------- fused (residual add + LayerNorm) -> matmul (+opt. gelu) ----------------
def _ln_linear_kernel(x_ref, res_ref, g_ref, b_ref, w_ref, wb_ref,
                      y_ref, newres_ref, xn_ref, *, eps, activation):
    j = pl.program_id(1)

    @pl.when(j == 0)
    def _():
        # residual add + layernorm: computed once per row tile, cached in VMEM,
        # reused for every N tile. Two-pass variance (no cancellation).
        x = x_ref[...].astype(jnp.float32)
        r = res_ref[...].astype(jnp.float32)
        s = x + r
        mean = jnp.mean(s, axis=-1, keepdims=True)
        centered = s - mean
        var = jnp.mean(centered * centered, axis=-1, keepdims=True)
        normed = centered * lax.rsqrt(var + eps)
        normed = (normed * g_ref[...].astype(jnp.float32)
                  + b_ref[...].astype(jnp.float32))
        xn_ref[...] = normed.astype(xn_ref.dtype)
        newres_ref[...] = s.astype(newres_ref.dtype)

    # Native-dtype operands (bf16 stays bf16 -> MXU fast path), f32 accumulation.
    acc = jnp.dot(xn_ref[...], w_ref[...], preferred_element_type=jnp.float32)
    acc = acc + wb_ref[...].astype(jnp.float32)
    if activation == "gelu_tanh":
        c = 0.7978845608028654  # sqrt(2/pi)
        acc = 0.5 * acc * (1.0 + jnp.tanh(c * (acc + 0.044715 * acc * acc * acc)))
    y_ref[...] = acc.astype(y_ref.dtype)


def ln_linear(x, residual, gamma, beta, w, wb, eps, activation=None,
              block_rows=512, block_n=512):
    """Returns (act((ln(x+residual)) @ w + wb), x+residual)."""
    T, Hd = x.shape
    N = w.shape[1]
    if residual is None:
        residual = jnp.zeros_like(x)
    tm = min(block_rows, T)
    assert T % tm == 0, "pad T to a multiple of the row tile"
    tn = _pick_tile(N, block_n)
    grid = (T // tm, N // tn)
    g2 = gamma.reshape(1, Hd)
    b2 = beta.reshape(1, Hd)
    wb2 = wb.reshape(1, N)
    return pl.pallas_call(
        functools.partial(_ln_linear_kernel, eps=eps, activation=activation),
        out_shape=(jax.ShapeDtypeStruct((T, N), x.dtype),
                   jax.ShapeDtypeStruct((T, Hd), x.dtype)),
        grid=grid,
        in_specs=[
            pl.BlockSpec((tm, Hd), lambda i, j: (i, 0)),   # x row tile (full K for LN)
            pl.BlockSpec((tm, Hd), lambda i, j: (i, 0)),   # residual row tile
            pl.BlockSpec((1, Hd), lambda i, j: (0, 0)),    # gamma
            pl.BlockSpec((1, Hd), lambda i, j: (0, 0)),    # beta
            pl.BlockSpec((Hd, tn), lambda i, j: (0, j)),   # weight N tile
            pl.BlockSpec((1, tn), lambda i, j: (0, j)),    # bias N tile
        ],
        out_specs=(pl.BlockSpec((tm, tn), lambda i, j: (i, j)),
                   pl.BlockSpec((tm, Hd), lambda i, j: (i, 0))),
        scratch_shapes=[pltpu.VMEM((tm, Hd), x.dtype)],    # cached LN output
        compiler_params=pltpu.CompilerParams(
            dimension_semantics=("parallel", "arbitrary"),
            vmem_limit_bytes=_vmem_limit_bytes()),
    )(x, residual, g2, b2, w, wb2)


# --------------------------- tiled matmul (+bias, opt. gelu) -----------------------------
def _linear_kernel(x_ref, w_ref, b_ref, y_ref, acc_ref, *, activation):
    k = pl.program_id(2)

    @pl.when(k == 0)
    def _():
        acc_ref[...] = jnp.zeros_like(acc_ref)

    acc_ref[...] += jnp.dot(x_ref[...], w_ref[...],
                            preferred_element_type=jnp.float32)

    @pl.when(k == pl.num_programs(2) - 1)
    def _():
        acc = acc_ref[...] + b_ref[...].astype(jnp.float32)
        if activation == "gelu_tanh":
            c = 0.7978845608028654
            acc = 0.5 * acc * (1.0 + jnp.tanh(c * (acc + 0.044715 * acc * acc * acc)))
        y_ref[...] = acc.astype(y_ref.dtype)


def linear(x, w, b, activation=None, block_rows=512, block_n=1024, block_k=1024):
    """y = act(x @ w + b), M/N/K tiled with a VMEM f32 accumulator."""
    T, K = x.shape
    N = w.shape[1]
    tm = min(block_rows, T)
    assert T % tm == 0, "pad T to a multiple of the row tile"
    tn = _pick_tile(N, block_n)
    tk = _pick_tile(K, block_k)
    grid = (T // tm, N // tn, K // tk)
    b2 = b.reshape(1, N)
    # NOTE: on v5e, if profiling shows exposed weight DMA at small T, deepen the
    # weight stream with pipeline_mode=pl.Buffered(3) on in_specs[1].
    return pl.pallas_call(
        functools.partial(_linear_kernel, activation=activation),
        out_shape=jax.ShapeDtypeStruct((T, N), x.dtype),
        grid=grid,
        in_specs=[pl.BlockSpec((tm, tk), lambda i, j, k: (i, k)),
                  pl.BlockSpec((tk, tn), lambda i, j, k: (k, j)),
                  pl.BlockSpec((1, tn), lambda i, j, k: (0, j))],
        out_specs=pl.BlockSpec((tm, tn), lambda i, j, k: (i, j)),
        scratch_shapes=[pltpu.VMEM((tm, tn), jnp.float32)],
        compiler_params=pltpu.CompilerParams(
            dimension_semantics=("parallel", "parallel", "arbitrary"),
            vmem_limit_bytes=_vmem_limit_bytes()),
    )(x, w, b2)


# --------------------- flash-style causal multi-query attention --------------------------
def _mqa_kernel(q_ref, k_ref, v_ref, o_ref, qs_sc, m_sc, l_sc, acc_sc,
                *, scale, tq, tkv, num_heads, head_size):
    qi = pl.program_id(0)
    ki = pl.program_id(1)
    H, D = num_heads, head_size

    @pl.when(ki == 0)
    def _():
        # Per-q-tile init: cache q*scale once (reused by every KV tile) and reset
        # the per-head online-softmax state.
        qs_sc[...] = q_ref[...] * scale
        m_sc[...] = jnp.full_like(m_sc, _NEG_INF)
        l_sc[...] = jnp.zeros_like(l_sc)
        acc_sc[...] = jnp.zeros_like(acc_sc)

    on_path = ki * tkv <= qi * tq + (tq - 1)        # tile at/below the causal diagonal
    needs_mask = (ki * tkv + tkv - 1) > (qi * tq)   # tile straddles the diagonal

    def tile_update(apply_mask):
        k = k_ref[...]
        v = v_ref[...]
        if apply_mask:
            # Mask bias built once per tile (shared by all heads).
            row = qi * tq + lax.broadcasted_iota(jnp.int32, (tq, tkv), 0)
            col = ki * tkv + lax.broadcasted_iota(jnp.int32, (tq, tkv), 1)
            bias = jnp.where(col <= row, 0.0, _NEG_INF).astype(jnp.float32)
        # The shared MQA K/V tile is loaded once and reused by every head.
        for h in range(H):
            q_h = qs_sc[:, h * D:(h + 1) * D]
            s = lax.dot_general(q_h, k, (((1,), (1,)), ((), ())),
                                preferred_element_type=jnp.float32)
            if apply_mask:
                s = s + bias
            m_prev = m_sc[h]
            m_new = jnp.maximum(m_prev, jnp.max(s, axis=-1, keepdims=True))
            a = jnp.exp(m_prev - m_new)
            p = jnp.exp(s - m_new)
            l_sc[h] = a * l_sc[h] + jnp.sum(p, axis=-1, keepdims=True)
            acc_sc[h] = a * acc_sc[h] + jnp.dot(
                p.astype(v.dtype), v, preferred_element_type=jnp.float32)
            m_sc[h] = m_new

    @pl.when(on_path & needs_mask)
    def _():
        tile_update(True)

    @pl.when(on_path & jnp.logical_not(needs_mask))
    def _():
        tile_update(False)

    @pl.when(ki == pl.num_programs(1) - 1)
    def _():
        for h in range(H):
            inv_l = pl.reciprocal(l_sc[h], approx=True)     # EUP slot, ~free
            o_ref[:, h * D:(h + 1) * D] = (acc_sc[h] * inv_l).astype(o_ref.dtype)


def mqa_attention(qkv, scale, num_heads, head_size, block_q=512, block_kv=512):
    """qkv: (T, (H+2)*D) = [q_head0 | ... | q_head{H-1} | k | v]. Returns (T, H*D).

    Grid is (q_tiles, kv_tiles); all H query heads share the single K/V tile that
    is resident in VMEM for a given (qi, ki), so K/V is streamed from HBM once
    (not H times). KV tiles above the causal diagonal are neither computed nor
    DMA'd (index_map clamp + consecutive-block dedup)."""
    T = qkv.shape[0]
    H, D = num_heads, head_size
    assert qkv.shape[1] == (H + 2) * D
    assert D % 128 == 0 or H == 1, "head_size must be a multiple of the 128 lane width"
    tq = min(block_q, T)
    tkv = min(block_kv, T)
    assert T % tq == 0 and T % tkv == 0
    grid = (T // tq, T // tkv)

    def kv_index(col_block):
        # Clamp causally-skipped KV tiles onto the last on-path tile so consecutive
        # grid steps see the same block index and Pallas elides the redundant DMA.
        def index_map(qi, ki):
            limit = (qi * tq + tq - 1) // tkv
            return (jnp.minimum(ki, limit), col_block)
        return index_map

    return pl.pallas_call(
        functools.partial(_mqa_kernel, scale=scale, tq=tq, tkv=tkv,
                          num_heads=H, head_size=D),
        out_shape=jax.ShapeDtypeStruct((T, H * D), qkv.dtype),
        grid=grid,
        in_specs=[pl.BlockSpec((tq, H * D), lambda qi, ki: (qi, 0)),    # q slab (all heads)
                  pl.BlockSpec((tkv, D), kv_index(H)),                  # shared k head
                  pl.BlockSpec((tkv, D), kv_index(H + 1))],             # shared v head
        out_specs=pl.BlockSpec((tq, H * D), lambda qi, ki: (qi, 0)),
        scratch_shapes=[pltpu.VMEM((tq, H * D), qkv.dtype),     # q * scale cache
                        pltpu.VMEM((H, tq, 1), jnp.float32),    # running max (per head)
                        pltpu.VMEM((H, tq, 1), jnp.float32),    # running denom (per head)
                        pltpu.VMEM((H, tq, D), jnp.float32)],   # output accumulator
        compiler_params=pltpu.CompilerParams(
            dimension_semantics=("parallel", "arbitrary"),
            vmem_limit_bytes=_vmem_limit_bytes()),
    )(qkv, qkv, qkv)


# --------------------------------------- Block -------------------------------------------
def block_forward(params, hidden_states, residual):
    """Prefill-path Block.forward. Returns (mlp_output, residual, layer_past)."""
    H = params["num_heads"]
    D = params["head_size"]
    eps = params["eps"]
    scale = D ** -0.5

    T = hidden_states.shape[0]
    tile_t = min(512, _round_up(T, 8))
    T_pad = _round_up(T, tile_t)
    if residual is None:
        residual = jnp.zeros_like(hidden_states)
    if T_pad != T:                     # pad the token tail instead of truncating it
        pad = ((0, T_pad - T), (0, 0))
        hidden_states = jnp.pad(hidden_states, pad)
        residual = jnp.pad(residual, pad)

    # ln_1 (+residual) fused into attn.c_attn
    qkv, res1 = ln_linear(hidden_states, residual,
                          params["ln1_g"], params["ln1_b"],
                          params["c_attn_w"], params["c_attn_b"], eps,
                          block_rows=tile_t)

    # prefill: layer_past[...] = key_value  (real tokens only)
    layer_past = qkv[:T, H * D:].reshape(T, 2, 1, D)
    # TODO(synk): decode path (scatter into layer_past via past_present_indices and
    #             non-causal attention against the full cache) is not implemented.

    # flash-style causal MQA, reading q/k/v straight from the qkv slab
    attn = mqa_attention(qkv, scale, H, D, block_q=tile_t, block_kv=tile_t)

    # attn.c_proj
    attn_out = linear(attn, params["attn_cproj_w"], params["attn_cproj_b"],
                      block_rows=tile_t)

    # ln_2 (+residual) fused into mlp.c_fc (+ gelu tanh)
    ff, res2 = ln_linear(attn_out, res1,
                         params["ln2_g"], params["ln2_b"],
                         params["mlp_cfc_w"], params["mlp_cfc_b"], eps,
                         activation="gelu_tanh", block_rows=tile_t)

    # mlp.c_proj
    mlp_out = linear(ff, params["mlp_cproj_w"], params["mlp_cproj_b"],
                     block_rows=tile_t)

    return mlp_out[:T], res2[:T], layer_past


# --------------------------------------- Setup -------------------------------------------
def init_params(key, hidden_size, num_heads, eps=1e-5, dtype=jnp.float32):
    head_size = hidden_size // num_heads
    inter = 4 * hidden_size
    qkv_out = (num_heads + 2) * head_size
    ks = jax.random.split(key, 8)
    std = 0.02
    return {
        "num_heads": num_heads,
        "head_size": head_size,
        "eps": eps,
        "ln1_g": jnp.ones((hidden_size,), dtype),
        "ln1_b": jnp.zeros((hidden_size,), dtype),
        "ln2_g": jnp.ones((hidden_size,), dtype),
        "ln2_b": jnp.zeros((hidden_size,), dtype),
        # weights stored (in, out) == PyTorch weight.T so kernels do x @ W
        "c_attn_w": (std * jax.random.normal(ks[0], (hidden_size, qkv_out))).astype(dtype),
        "c_attn_b": (std * jax.random.normal(ks[1], (qkv_out,))).astype(dtype),
        "attn_cproj_w": (std * jax.random.normal(ks[2], (hidden_size, hidden_size))).astype(dtype),
        "attn_cproj_b": (std * jax.random.normal(ks[3], (hidden_size,))).astype(dtype),
        "mlp_cfc_w": (std * jax.random.normal(ks[4], (hidden_size, inter))).astype(dtype),
        "mlp_cfc_b": (std * jax.random.normal(ks[5], (inter,))).astype(dtype),
        "mlp_cproj_w": (std * jax.random.normal(ks[6], (inter, hidden_size))).astype(dtype),
        "mlp_cproj_b": (std * jax.random.normal(ks[7], (hidden_size,))).astype(dtype),
    }


def _ref_block_forward(params, h, r):
    """Pure-JAX reference for correctness checking."""
    H, D, eps = params["num_heads"], params["head_size"], params["eps"]

    def ln(x, res, g, b):
        s = x + res
        mu = jnp.mean(s, axis=-1, keepdims=True)
        var = jnp.mean((s - mu) ** 2, axis=-1, keepdims=True)
        return (s - mu) / jnp.sqrt(var + eps) * g + b, s

    x, res1 = ln(h, r, params["ln1_g"], params["ln1_b"])
    qkv = x @ params["c_attn_w"] + params["c_attn_b"]
    T = qkv.shape[0]
    q = qkv[:, :H * D].reshape(T, H, D)
    k = qkv[:, H * D:H * D + D]
    v = qkv[:, H * D + D:]
    s = jnp.einsum("thd,sd->ths", q, k) * (D ** -0.5)
    mask = jnp.tril(jnp.ones((T, T), bool))[:, None, :]
    s = jnp.where(mask, s, -jnp.inf)
    p = jax.nn.softmax(s, axis=-1)
    o = jnp.einsum("ths,sd->thd", p, v).reshape(T, H * D)
    attn_out = o @ params["attn_cproj_w"] + params["attn_cproj_b"]
    x2, res2 = ln(attn_out, res1, params["ln2_g"], params["ln2_b"])
    ff = x2 @ params["mlp_cfc_w"] + params["mlp_cfc_b"]
    c = 0.7978845608028654
    ff = 0.5 * ff * (1.0 + jnp.tanh(c * (ff + 0.044715 * ff ** 3)))
    out = ff @ params["mlp_cproj_w"] + params["mlp_cproj_b"]
    return out, res2


if __name__ == "__main__":
    key = jax.random.PRNGKey(0)
    seq = 16            # total tokens (single sequence, prefill)
    hidden = 256
    num_heads = 2       # head_size = 128, same head dim as the real SantaCoder model

    kp, kx, kr = jax.random.split(key, 3)
    params = init_params(kp, hidden, num_heads)
    hidden_states = jax.random.normal(kx, (seq, hidden), jnp.float32)
    residual = jax.random.normal(kr, (seq, hidden), jnp.float32)

    mlp_out, new_residual, layer_past = block_forward(params, hidden_states, residual)
    jax.block_until_ready((mlp_out, new_residual, layer_past))

    assert mlp_out.shape == (seq, hidden)
    assert new_residual.shape == (seq, hidden)
    assert layer_past.shape == (seq, 2, 1, hidden // num_heads)
    assert bool(jnp.all(jnp.isfinite(mlp_out)))

    ref_out, ref_res = _ref_block_forward(params, hidden_states, residual)
    assert bool(jnp.allclose(mlp_out, ref_out, rtol=5e-2, atol=5e-2))
    assert bool(jnp.allclose(new_residual, ref_res, rtol=5e-2, atol=5e-2))

    # Multi-tile attention check: exercises the clamped KV index_map, the
    # masked/unmasked tile branches and cross-tile online-softmax accumulation.
    T2, H2, D2 = 64, 2, 128
    qkv2 = jax.random.normal(jax.random.PRNGKey(1), (T2, (H2 + 2) * D2), jnp.float32)
    attn2 = mqa_attention(qkv2, D2 ** -0.5, H2, D2, block_q=16, block_kv=16)
    jax.block_until_ready(attn2)
    q2 = qkv2[:, :H2 * D2].reshape(T2, H2, D2)
    k2 = qkv2[:, H2 * D2:(H2 + 1) * D2]
    v2 = qkv2[:, (H2 + 1) * D2:]
    s2 = jnp.einsum("thd,sd->ths", q2, k2) * (D2 ** -0.5)
    mask2 = jnp.tril(jnp.ones((T2, T2), bool))[:, None, :]
    p2 = jax.nn.softmax(jnp.where(mask2, s2, -jnp.inf), axis=-1)
    ref2 = jnp.einsum("ths,sd->thd", p2, v2).reshape(T2, H2 * D2)
    assert bool(jnp.allclose(attn2, ref2, rtol=5e-2, atol=5e-2))

    # bf16 end-to-end smoke run (the recommended production dtype): same kernels,
    # bf16 MXU operands with f32 accumulators and f32 LN/softmax math.
    params_bf = init_params(kp, hidden, num_heads, dtype=jnp.bfloat16)
    out_bf, res_bf, past_bf = block_forward(
        params_bf, hidden_states.astype(jnp.bfloat16), residual.astype(jnp.bfloat16))
    jax.block_until_ready((out_bf, res_bf, past_bf))
    assert out_bf.dtype == jnp.bfloat16 and out_bf.shape == (seq, hidden)
    assert bool(jnp.all(jnp.isfinite(out_bf.astype(jnp.float32))))

    print("KERNEL_OK")
</pallas_src>

<mosaic_0001>
module attributes {stable_mosaic.version = 11 : i64} {
  func.func @_ln_linear_kernel(%arg0: i32, %arg1: i32, %arg2: memref<16x256xf32, #tpu.memory_space<vmem>>, %arg3: memref<16x256xf32, #tpu.memory_space<vmem>>, %arg4: memref<1x256xf32, #tpu.memory_space<vmem>>, %arg5: memref<1x256xf32, #tpu.memory_space<vmem>>, %arg6: memref<256x512xf32, #tpu.memory_space<vmem>>, %arg7: memref<1x512xf32, #tpu.memory_space<vmem>>, %arg8: memref<16x512xf32, #tpu.memory_space<vmem>>, %arg9: memref<16x256xf32, #tpu.memory_space<vmem>>, %arg10: memref<16x256xf32, #tpu.memory_space<vmem>>) attributes {dimension_semantics = [#tpu.dimension_semantics<parallel>, #tpu.dimension_semantics<arbitrary>], iteration_bounds = array<i64: 1, 1>, scalar_prefetch = 0 : i64, scratch_operands = 1 : i64, tpu.core_type = #tpu.core_type<tc>, window_params = [{transform_indices = @transform_0, window_bounds = array<i64: 16, 256>}, {transform_indices = @transform_1, window_bounds = array<i64: 16, 256>}, {pipeline_mode = #tpu.pipeline_mode<synchronous>, transform_indices = @transform_2, window_bounds = array<i64: 1, 256>}, {pipeline_mode = #tpu.pipeline_mode<synchronous>, transform_indices = @transform_3, window_bounds = array<i64: 1, 256>}, {transform_indices = @transform_4, window_bounds = array<i64: 256, 512>}, {transform_indices = @transform_5, window_bounds = array<i64: 1, 512>}, {transform_indices = @transform_6, window_bounds = array<i64: 16, 512>}, {transform_indices = @transform_7, window_bounds = array<i64: 16, 256>}]} {
    %c0_i32 = arith.constant 0 : i32
    %0 = arith.cmpi eq, %arg1, %c0_i32 : i32
    %1 = arith.extui %0 : i1 to i32
    %c0_i32_0 = arith.constant 0 : i32
    %2 = arith.cmpi ne, %1, %c0_i32_0 : i32
    scf.if %2 {
      %c0_8 = arith.constant 0 : index
      %c0_9 = arith.constant 0 : index
      %10 = vector.load %arg2[%c0_8, %c0_9] : memref<16x256xf32, #tpu.memory_space<vmem>>, vector<16x256xf32>
      %c0_10 = arith.constant 0 : index
      %c0_11 = arith.constant 0 : index
      %11 = vector.load %arg3[%c0_10, %c0_11] : memref<16x256xf32, #tpu.memory_space<vmem>>, vector<16x256xf32>
      %12 = arith.addf %10, %11 : vector<16x256xf32>
      %cst_12 = arith.constant dense<0.000000e+00> : vector<16xf32>
      %13 = vector.multi_reduction <add>, %12, %cst_12 [1] : vector<16x256xf32> to vector<16xf32>
      %14 = vector.shape_cast %13 : vector<16xf32> to vector<16x1xf32>
      %cst_13 = arith.constant 2.560000e+02 : f32
      %15 = vector.broadcast %cst_13 : f32 to vector<16x1xf32>
      %16 = arith.divf %14, %15 : vector<16x1xf32>
      %17 = vector.broadcast %16 : vector<16x1xf32> to vector<16x256xf32>
      %18 = arith.subf %12, %17 : vector<16x256xf32>
      %19 = arith.mulf %18, %18 : vector<16x256xf32>
      %cst_14 = arith.constant dense<0.000000e+00> : vector<16xf32>
      %20 = vector.multi_reduction <add>, %19, %cst_14 [1] : vector<16x256xf32> to vector<16xf32>
      %21 = vector.shape_cast %20 : vector<16xf32> to vector<16x1xf32>
      %cst_15 = arith.constant 2.560000e+02 : f32
      %22 = vector.broadcast %cst_15 : f32 to vector<16x1xf32>
      %23 = arith.divf %21, %22 : vector<16x1xf32>
      %cst_16 = arith.constant 9.99999974E-6 : f32
      %24 = vector.broadcast %cst_16 : f32 to vector<16x1xf32>
      %25 = arith.addf %23, %24 : vector<16x1xf32>
      %26 = math.rsqrt %25 : vector<16x1xf32>
      %27 = vector.broadcast %26 : vector<16x1xf32> to vector<16x256xf32>
      %28 = arith.mulf %18, %27 : vector<16x256xf32>
      %c0_17 = arith.constant 0 : index
      %c0_18 = arith.constant 0 : index
      %29 = vector.load %arg4[%c0_17, %c0_18] : memref<1x256xf32, #tpu.memory_space<vmem>>, vector<1x256xf32>
      %30 = vector.broadcast %29 : vector<1x256xf32> to vector<16x256xf32>
      %31 = arith.mulf %28, %30 : vector<16x256xf32>
      %c0_19 = arith.constant 0 : index
      %c0_20 = arith.constant 0 : index
      %32 = vector.load %arg5[%c0_19, %c0_20] : memref<1x256xf32, #tpu.memory_space<vmem>>, vector<1x256xf32>
      %33 = vector.broadcast %32 : vector<1x256xf32> to vector<16x256xf32>
      %34 = arith.addf %31, %33 : vector<16x256xf32>
      %c0_21 = arith.constant 0 : index
      %c0_22 = arith.constant 0 : index
      %35 = vector.load %arg10[%c0_21, %c0_22] : memref<16x256xf32, #tpu.memory_space<vmem>>, vector<16x256xf32>
      tpu.vector_store %arg10[%c0_21, %c0_22], %34 {strides = array<i32>} : memref<16x256xf32, #tpu.memory_space<vmem>>, vector<16x256xf32>,
      %c0_23 = arith.constant 0 : index
      %c0_24 = arith.constant 0 : index
      %36 = vector.load %arg9[%c0_23, %c0_24] : memref<16x256xf32, #tpu.memory_space<vmem>>, vector<16x256xf32>
      tpu.vector_store %arg9[%c0_23, %c0_24], %12 {strides = array<i32>} : memref<16x256xf32, #tpu.memory_space<vmem>>, vector<16x256xf32>,
    } else {
    }
    %c0 = arith.constant 0 : index
    %c0_1 = arith.constant 0 : index
    %3 = vector.load %arg10[%c0, %c0_1] : memref<16x256xf32, #tpu.memory_space<vmem>>, vector<16x256xf32>
    %c0_2 = arith.constant 0 : index
    %c0_3 = arith.constant 0 : index
    %4 = vector.load %arg6[%c0_2, %c0_3] : memref<256x512xf32, #tpu.memory_space<vmem>>, vector<256x512xf32>
    %cst = arith.constant dense<0.000000e+00> : vector<16x512xf32>
    %5 = tpu.matmul %3, %4, %cst {dimension_numbers = #tpu.dot_dimension_numbers<[1], [0], [0], [1], [0, 0, 1, 1], [], []>} : vector<16x256xf32>, vector<256x512xf32>, vector<16x512xf32> -> vector<16x512xf32>
    %c0_4 = arith.constant 0 : index
    %c0_5 = arith.constant 0 : index
    %6 = vector.load %arg7[%c0_4, %c0_5] : memref<1x512xf32, #tpu.memory_space<vmem>>, vector<1x512xf32>
    %7 = vector.broadcast %6 : vector<1x512xf32> to vector<16x512xf32>
    %8 = arith.addf %5, %7 : vector<16x512xf32>
    %c0_6 = arith.constant 0 : index
    %c0_7 = arith.constant 0 : index
    %9 = vector.load %arg8[%c0_6, %c0_7] : memref<16x512xf32, #tpu.memory_space<vmem>>, vector<16x512xf32>
    tpu.vector_store %arg8[%c0_6, %c0_7], %8 {strides = array<i32>} : memref<16x512xf32, #tpu.memory_space<vmem>>, vector<16x512xf32>,
    return
  }
  func.func @transform_0(%arg0: i32, %arg1: i32) -> (i32, i32) {
    %c0_i32 = arith.constant 0 : i32
    %c0_i32_0 = arith.constant 0 : i32
    return %arg0, %c0_i32 : i32, i32
  }
  func.func @transform_1(%arg0: i32, %arg1: i32) -> (i32, i32) {
    %c0_i32 = arith.constant 0 : i32
    %c0_i32_0 = arith.constant 0 : i32
    return %arg0, %c0_i32 : i32, i32
  }
  func.func @transform_2(%arg0: i32, %arg1: i32) -> (i32, i32) {
    %c0_i32 = arith.constant 0 : i32
    %c0_i32_0 = arith.constant 0 : i32
    %c0_i32_1 = arith.constant 0 : i32
    return %c0_i32, %c0_i32_0 : i32, i32
  }
  func.func @transform_3(%arg0: i32, %arg1: i32) -> (i32, i32) {
    %c0_i32 = arith.constant 0 : i32
    %c0_i32_0 = arith.constant 0 : i32
    %c0_i32_1 = arith.constant 0 : i32
    return %c0_i32, %c0_i32_0 : i32, i32
  }
  func.func @transform_4(%arg0: i32, %arg1: i32) -> (i32, i32) {
    %c0_i32 = arith.constant 0 : i32
    %c0_i32_0 = arith.constant 0 : i32
    return %c0_i32, %arg1 : i32, i32
  }
  func.func @transform_5(%arg0: i32, %arg1: i32) -> (i32, i32) {
    %c0_i32 = arith.constant 0 : i32
    %c0_i32_0 = arith.constant 0 : i32
    return %c0_i32, %arg1 : i32, i32
  }
  func.func @transform_6(%arg0: i32, %arg1: i32) -> (i32, i32) {
    %c0_i32 = arith.constant 0 : i32
    return %arg0, %arg1 : i32, i32
  }
  func.func @transform_7(%arg0: i32, %arg1: i32) -> (i32, i32) {
    %c0_i32 = arith.constant 0 : i32
    %c0_i32_0 = arith.constant 0 : i32
    return %arg0, %c0_i32 : i32, i32
  }
}

</mosaic_0001>

<llo_original>
// kernel: tpu_custom_call.1
$region0: #{tpu_custom_call.1}
  #allocation0 [shape = 'u32[]', space=smem, size = 0x4, offset = 0x4, fixed_abs, tag = 'smem constant byte address 0x4 - core index']
  #allocation1 [shape = 'u32[144,128]{1,0:T(1,128)}', space=vmem, size = 0x12000, scoped, tag = 'internal scratch']
  #allocation2 [shape = 'f32[16,256]{1,0:T(8,128)}', space=vmem, size = 0x4000, scoped, tag = 'scratch operand']
  %s0 = inlined_call_operand.hbm [shape: f32[16,256], index: 0, kind: input, shape index: {}]
  %s1 = inlined_call_operand.hbm [shape: f32[16,256], index: 1, kind: input, shape index: {}]
  %s2 = inlined_call_operand.hbm [shape: f32[1,256], index: 2, kind: input, shape index: {}]
  %s3 = inlined_call_operand.hbm [shape: f32[1,256], index: 3, kind: input, shape index: {}]
  %s4 = inlined_call_operand.hbm [shape: f32[256,512], index: 4, kind: input, shape index: {}]
  %s5 = inlined_call_operand.hbm [shape: f32[1,512], index: 5, kind: input, shape index: {}]
  %s6 = inlined_call_operand.hbm [shape: f32[16,512], index: 6, kind: output, shape index: {0}]
  %s7 = inlined_call_operand.hbm [shape: f32[16,256], index: 7, kind: output, shape index: {1}]
  %8 = xla_tuple %s6, %s7
  %s9 = sld [smem:[#allocation0]]
  $region70: #{tpu_custom_call.1} parent=0
    _
  %s11 = ssub.s32 1, %s9
  %s12 = scalar_select 0, %s11, %s9
  $region1: #{tpu_custom_call.1} parent=0
    #allocation3 [shape = 'u8[16384]{0}', space=vmem, size = 0x4000, scoped, tag = 'input window, operand 0, single buffered']
    #allocation4 [shape = 's32[1]{0}', space=sflag, size = 0x4, scoped, tag = 'scoped memory for tpu_custom_call.1']
    #allocation5 [shape = 's32[1]{0}', space=sflag, size = 0x4, scoped, tag = 'scoped memory for tpu_custom_call.1']
    #allocation6 [shape = 'u8[16384]{0}', space=vmem, size = 0x4000, scoped, tag = 'input window, operand 1, single buffered']
    #allocation7 [shape = 's32[1]{0}', space=sflag, size = 0x4, scoped, tag = 'scoped memory for tpu_custom_call.1']
    #allocation8 [shape = 'u8[1024]{0}', space=vmem, size = 0x400, scoped, tag = 'input window, operand 2, single buffered']
    #allocation9 [shape = 'u8[1024]{0}', space=vmem, size = 0x400, scoped, tag = 'input window, operand 3, single buffered']
    #allocation10 [shape = 's32[1]{0}', space=sflag, size = 0x4, scoped, tag = 'scoped memory for tpu_custom_call.1']
    #allocation11 [shape = 'u8[524288]{0}', space=vmem, size = 0x80000, scoped, tag = 'input window, operand 4, single buffered']
    #allocation12 [shape = 'u8[2048]{0}', space=vmem, size = 0x800, scoped, tag = 'input window, operand 5, single buffered']
    #allocation13 [shape = 's32[1]{0}', space=sflag, size = 0x4, scoped, tag = 'scoped memory for tpu_custom_call.1']
    #allocation14 [shape = 'u8[32768]{0}', space=vmem, size = 0x8000, scoped, tag = 'output window, operand 0, single buffered']
    #allocation15 [shape = 'u8[16384]{0}', space=vmem, size = 0x4000, scoped, tag = 'output window, operand 1, single buffered']
    #allocation16 [shape = 's32[1]{0}', space=sflag, size = 0x4, scoped, tag = 'scoped memory for tpu_custom_call.1']
    %13 = vsyncpa [#allocation4], 0
    %14 = vsyncpa [#allocation7], 0
    %15 = vsyncpa [#allocation10], 0
    %16 = vsyncpa [#allocation13], 0
    %17 = vsyncpa [#allocation5], 0
    %18 = vsyncpa [#allocation16], 0
    // Predicated region
    $region2: #{tpu_custom_call.1} parent=1 // pred_check
      _
    $region3: #{tpu_custom_call.1} parent=1 // pred_check_branch
      %20 = sbr.rel (0) target = $region5
    $region4: #{tpu_custom_call.1} parent=1 // pred_region
      %s22 = ssub.s32 512, 512
      %23 = vsyncadd [#allocation4], %s22
      %s24 = sshll.u32 [#allocation3], 4
      %s25 = int_to_ptr.vmem [resolvable:$true] %s24
      %30 = dma.hbm_to_vmem [thread:$0]  %s0, 512, %s25, [#allocation4], 256, 256, 16
    $region5: #{tpu_custom_call.1} parent=1 // pred_fallthru
      _
    // Predicated region
    $region6: #{tpu_custom_call.1} parent=1 // pred_check
      _
    $region7: #{tpu_custom_call.1} parent=1 // pred_check_branch
      %32 = sbr.rel (0) target = $region9
    $region8: #{tpu_custom_call.1} parent=1 // pred_region
      %s34 = ssub.s32 512, 512
      %35 = vsyncadd [#allocation7], %s34
      %s36 = sshll.u32 [#allocation6], 4
      %s37 = int_to_ptr.vmem [resolvable:$true] %s36
      %42 = dma.hbm_to_vmem [thread:$0]  %s1, 512, %s37, [#allocation7], 256, 256, 16
    $region9: #{tpu_custom_call.1} parent=1 // pred_fallthru
      _
    // Predicated region
    $region10: #{tpu_custom_call.1} parent=1 // pred_check
      _
    $region11: #{tpu_custom_call.1} parent=1 // pred_check_branch
      %44 = sbr.rel (0) target = $region13
    $region12: #{tpu_custom_call.1} parent=1 // pred_region
      %s46 = ssub.s32 32, 32
      %47 = vsyncadd [#allocation7], %s46
      %s49 = sshll.u32 [#allocation8], 4
      %s50 = int_to_ptr.vmem [resolvable:$true] %s49
      %52 = dma.hbm_to_vmem [thread:$0]  %s2, 32, %s50, [#allocation7]
    $region13: #{tpu_custom_call.1} parent=1 // pred_fallthru
      _
    // Predicated region
    $region14: #{tpu_custom_call.1} parent=1 // pred_check
      _
    $region15: #{tpu_custom_call.1} parent=1 // pred_check_branch
      %54 = sbr.rel (0) target = $region17
    $region16: #{tpu_custom_call.1} parent=1 // pred_region
      %s56 = ssub.s32 32, 32
      %57 = vsyncadd [#allocation10], %s56
      %s59 = sshll.u32 [#allocation9], 4
      %s60 = int_to_ptr.vmem [resolvable:$true] %s59
      %62 = dma.hbm_to_vmem [thread:$0]  %s3, 32, %s60, [#allocation10]
    $region17: #{tpu_custom_call.1} parent=1 // pred_fallthru
      _
    // Predicated region
    $region18: #{tpu_custom_call.1} parent=1 // pred_check
      _
    $region19: #{tpu_custom_call.1} parent=1 // pred_check_branch
      %64 = sbr.rel (0) target = $region21
    $region20: #{tpu_custom_call.1} parent=1 // pred_region
      %s66 = ssub.s32 16384, 16384
      %67 = vsyncadd [#allocation10], %s66
      %s68 = sshll.u32 [#allocation11], 4
      %s69 = int_to_ptr.vmem [resolvable:$true] %s68
      %74 = dma.hbm_to_vmem [thread:$0]  %s4, 16384, %s69, [#allocation10], 512, 512, 32
    $region21: #{tpu_custom_call.1} parent=1 // pred_fallthru
      _
    // Predicated region
    $region22: #{tpu_custom_call.1} parent=1 // pred_check
      _
    $region23: #{tpu_custom_call.1} parent=1 // pred_check_branch
      %76 = sbr.rel (0) target = $region25
    $region24: #{tpu_custom_call.1} parent=1 // pred_region
      %s78 = ssub.s32 64, 64
      %79 = vsyncadd [#allocation13], %s78
      %s81 = sshll.u32 [#allocation12], 4
      %s82 = int_to_ptr.vmem [resolvable:$true] %s81
      %84 = dma.hbm_to_vmem [thread:$0]  %s5, 64, %s82, [#allocation13]
    $region25: #{tpu_custom_call.1} parent=1 // pred_fallthru
      _
    // Predicated region
    $region26: #{tpu_custom_call.1} parent=1 // pred_check
      _
    $region27: #{tpu_custom_call.1} parent=1 // pred_check_branch
      %86 = sbr.rel (0) target = $region29
    $region28: #{tpu_custom_call.1} parent=1 // pred_region
      %87 = dma.done [#allocation4], 512
    $region29: #{tpu_custom_call.1} parent=1 // pred_fallthru
      _
    // Predicated region
    $region30: #{tpu_custom_call.1} parent=1 // pred_check
      _
    $region31: #{tpu_custom_call.1} parent=1 // pred_check_branch
      %89 = sbr.rel (0) target = $region33
    $region32: #{tpu_custom_call.1} parent=1 // pred_region
      %90 = dma.done [#allocation7], 512
    $region33: #{tpu_custom_call.1} parent=1 // pred_fallthru
      _
    // Predicated region
    $region34: #{tpu_custom_call.1} parent=1 // pred_check
      _
    $region35: #{tpu_custom_call.1} parent=1 // pred_check_branch
      %92 = sbr.rel (0) target = $region37
    $region36: #{tpu_custom_call.1} parent=1 // pred_region
      %93 = dma.done [#allocation7], 32
    $region37: #{tpu_custom_call.1} parent=1 // pred_fallthru
      _
    // Predicated region
    $region38: #{tpu_custom_call.1} parent=1 // pred_check
      _
    $region39: #{tpu_custom_call.1} parent=1 // pred_check_branch
      %95 = sbr.rel (0) target = $region41
    $region40: #{tpu_custom_call.1} parent=1 // pred_region
      %96 = dma.done [#allocation10], 32
    $region41: #{tpu_custom_call.1} parent=1 // pred_fallthru
      _
    // Predicated region
    $region42: #{tpu_custom_call.1} parent=1 // pred_check
      _
    $region43: #{tpu_custom_call.1} parent=1 // pred_check_branch
      %98 = sbr.rel (0) target = $region45
    $region44: #{tpu_custom_call.1} parent=1 // pred_region
      %99 = dma.done [#allocation10], 16384
    $region45: #{tpu_custom_call.1} parent=1 // pred_fallthru
      _
    // Predicated region
    $region46: #{tpu_custom_call.1} parent=1 // pred_check
      _
    $region47: #{tpu_custom_call.1} parent=1 // pred_check_branch
      %101 = sbr.rel (0) target = $region49
    $region48: #{tpu_custom_call.1} parent=1 // pred_region
      %102 = dma.done [#allocation13], 64
    $region49: #{tpu_custom_call.1} parent=1 // pred_fallthru
      _
    %p103 = scmp.eq.s32.totalorder 0, 0
    // Predicated region
    $region50: #{tpu_custom_call.1} parent=1 // pred_check
      %p104 = pneg %p103
    $region51: #{tpu_custom_call.1} parent=1 // pred_check_branch
      %106 = sbr.rel (%p104) target = $region53
    $region52: #{tpu_custom_call.1} parent=1 // pred_region
      %v107 = vld [vmem:[#allocation3] sm:$0xff]
      %v108 = vld [vmem:[#allocation3 + $0x8] sm:$0xff]
      %v109 = vld [vmem:[#allocation3 + $0x10] sm:$0xff]
      %v110 = vld [vmem:[#allocation3 + $0x18] sm:$0xff]
      %v111 = vld [vmem:[#allocation6] sm:$0xff]
      %v112 = vld [vmem:[#allocation6 + $0x8] sm:$0xff]
      %v113 = vld [vmem:[#allocation6 + $0x10] sm:$0xff]
      %v114 = vld [vmem:[#allocation6 + $0x18] sm:$0xff]
      %v115 = vadd.f32 %v107, %v111
      %v116 = vadd.f32 %v108, %v112
      %v117 = vadd.f32 %v109, %v113
      %v118 = vadd.f32 %v110, %v114
      %v119 = vadd.f32 %v115, %v116
      %120 = vadd.xlane.f32.xlu0 %v119
      %v121 = vpop.xlane.xlu0 %120
      %v122 = vadd.f32 %v117, %v118
      %123 = vadd.xlane.f32.xlu0 %v122
      %v124 = vpop.xlane.xlu0 %123
      %v125 = vrcp.pop 256.0
      %v126 = vmul.f32 %v121, %v125
      %v127 = vmul.f32 %v124, %v125
      %v128 = vsub.f32 %v115, %v126
      %v129 = vsub.f32 %v116, %v126
      %v130 = vsub.f32 %v117, %v127
      %v131 = vsub.f32 %v118, %v127
      %v132 = vmul.f32 %v128, %v128
      %v133 = vmul.f32 %v129, %v129
      %v134 = vmul.f32 %v130, %v130
      %v135 = vmul.f32 %v131, %v131
      %v136 = vadd.f32 %v132, %v133
      %137 = vadd.xlane.f32.xlu0 %v136
      %v138 = vpop.xlane.xlu0 %137
      %v139 = vadd.f32 %v134, %v135
      %140 = vadd.xlane.f32.xlu0 %v139
      %v141 = vpop.xlane.xlu0 %140
      %v142 = vmul.f32 %v138, %v125
      %v143 = vmul.f32 %v141, %v125
      %v144 = vadd.f32 %v142, 1e-05
      %v145 = vadd.f32 %v143, 1e-05
      %v146 = vrsqrt.pop %v144
      %v147 = vrsqrt.pop %v145
      %v148 = vmul.f32 %v128, %v146
      %v149 = vmul.f32 %v129, %v146
      %v150 = vmul.f32 %v130, %v147
      %v151 = vmul.f32 %v131, %v147
      %v152 = vld [vmem:[#allocation8] sm:$0x3]
      %v154 = vlaneseq
      %v155 = vshrl.u32 %v154, 7
      %v156 = vsub.s32 0, %v155
      %v157 = vrot.slane %v152, %v156
      %v158 = vlaneseq
      %v159 = vshrl.u32 %v158, 7
      %v160 = vsub.s32 1, %v159
      %v161 = vrot.slane %v152, %v160
      %v164 = vmul.f32 %v148, %v157
      %v165 = vmul.f32 %v149, %v161
      %v166 = vmul.f32 %v150, %v157
      %v167 = vmul.f32 %v151, %v161
      %v168 = vld [vmem:[#allocation9] sm:$0x3]
      %v170 = vlaneseq
      %v171 = vshrl.u32 %v170, 7
      %v172 = vsub.s32 0, %v171
      %v173 = vrot.slane %v168, %v172
      %v174 = vlaneseq
      %v175 = vshrl.u32 %v174, 7
      %v176 = vsub.s32 1, %v175
      %v177 = vrot.slane %v168, %v176
      %v180 = vadd.f32 %v164, %v173
      %v181 = vadd.f32 %v165, %v177
      %v182 = vadd.f32 %v166, %v173
      %v183 = vadd.f32 %v167, %v177
      %184 = vst [vmem:[#allocation2] sm:$0xff] %v180
      %185 = vst [vmem:[#allocation2 + $0x8] sm:$0xff] %v181
      %186 = vst [vmem:[#allocation2 + $0x10] sm:$0xff] %v182
      %187 = vst [vmem:[#allocation2 + $0x18] sm:$0xff] %v183
      %188 = vst [vmem:[#allocation15] sm:$0xff] %v115
      %189 = vst [vmem:[#allocation15 + $0x8] sm:$0xff] %v116
      %190 = vst [vmem:[#allocation15 + $0x10] sm:$0xff] %v117
      %191 = vst [vmem:[#allocation15 + $0x18] sm:$0xff] %v118
    $region53: #{tpu_custom_call.1} parent=1 // pred_fallthru
      _
    %v192 = vld [vmem:[#allocation2] sm:$0xff]
    %v193 = vld [vmem:[#allocation2 + $0x8] sm:$0xff]
    %v194 = vld [vmem:[#allocation2 + $0x10] sm:$0xff]
    %v195 = vld [vmem:[#allocation2 + $0x18] sm:$0xff]
    %v196 = vld [vmem:[#allocation11] sm:$0xff]
    %v197 = vld [vmem:[#allocation11 + $0x8] sm:$0xff]
    %v198 = vld [vmem:[#allocation11 + $0x10] sm:$0xff]
    %v199 = vld [vmem:[#allocation11 + $0x18] sm:$0xff]
    %v200 = vld [vmem:[#allocation11 + $0x20] sm:$0xff]
    %v201 = vld [vmem:[#allocation11 + $0x28] sm:$0xff]
    %v202 = vld [vmem:[#allocation11 + $0x30] sm:$0xff]
    %v203 = vld [vmem:[#allocation11 + $0x38] sm:$0xff]
    %v204 = vld [vmem:[#allocation11 + $0x40] sm:$0xff]
    %v205 = vld [vmem:[#allocation11 + $0x48] sm:$0xff]
    %v206 = vld [vmem:[#allocation11 + $0x50] sm:$0xff]
    %v207 = vld [vmem:[#allocation11 + $0x58] sm:$0xff]
    %v208 = vld [vmem:[#allocation11 + $0x60] sm:$0xff]
    %v209 = vld [vmem:[#allocation11 + $0x68] sm:$0xff]
    %v210 = vld [vmem:[#allocation11 + $0x70] sm:$0xff]
    %v211 = vld [vmem:[#allocation11 + $0x78] sm:$0xff]
    %v212 = vld [vmem:[#allocation11 + $0x80] sm:$0xff]
    %v213 = vld [vmem:[#allocation11 + $0x88] sm:$0xff]
    %v214 = vld [vmem:[#allocation11 + $0x90] sm:$0xff]
    %v215 = vld [vmem:[#allocation11 + $0x98] sm:$0xff]
    %v216 = vld [vmem:[#allocation11 + $0xa0] sm:$0xff]
    %v217 = vld [vmem:[#allocation11 + $0xa8] sm:$0xff]
    %v218 = vld [vmem:[#allocation11 + $0xb0] sm:$0xff]
    %v219 = vld [vmem:[#allocation11 + $0xb8] sm:$0xff]
    %v220 = vld [vmem:[#allocation11 + $0xc0] sm:$0xff]
    %v221 = vld [vmem:[#allocation11 + $0xc8] sm:$0xff]
    %v222 = vld [vmem:[#allocation11 + $0xd0] sm:$0xff]
    %v223 = vld [vmem:[#allocation11 + $0xd8] sm:$0xff]
    %v224 = vld [vmem:[#allocation11 + $0xe0] sm:$0xff]
    %v225 = vld [vmem:[#allocation11 + $0xe8] sm:$0xff]
    %v226 = vld [vmem:[#allocation11 + $0xf0] sm:$0xff]
    %v227 = vld [vmem:[#allocation11 + $0xf8] sm:$0xff]
    %v228 = vld [vmem:[#allocation11 + $0x100] sm:$0xff]
    %v229 = vld [vmem:[#allocation11 + $0x108] sm:$0xff]
    %v230 = vld [vmem:[#allocation11 + $0x110] sm:$0xff]
    %v231 = vld [vmem:[#allocation11 + $0x118] sm:$0xff]
    %v232 = vld [vmem:[#allocation11 + $0x120] sm:$0xff]
    %v233 = vld [vmem:[#allocation11 + $0x128] sm:$0xff]
    %v234 = vld [vmem:[#allocation11 + $0x130] sm:$0xff]
    %v235 = vld [vmem:[#allocation11 + $0x138] sm:$0xff]
    %v236 = vld [vmem:[#allocation11 + $0x140] sm:$0xff]
    %v237 = vld [vmem:[#allocation11 + $0x148] sm:$0xff]
    %v238 = vld [vmem:[#allocation11 + $0x150] sm:$0xff]
    %v239 = vld [vmem:[#allocation11 + $0x158] sm:$0xff]
    %v240 = vld [vmem:[#allocation11 + $0x160] sm:$0xff]
    %v241 = vld [vmem:[#allocation11 + $0x168] sm:$0xff]
    %v242 = vld [vmem:[#allocation11 + $0x170] sm:$0xff]
    %v243 = vld [vmem:[#allocation11 + $0x178] sm:$0xff]
    %v244 = vld [vmem:[#allocation11 + $0x180] sm:$0xff]
    %v245 = vld [vmem:[#allocation11 + $0x188] sm:$0xff]
    %v246 = vld [vmem:[#allocation11 + $0x190] sm:$0xff]
    %v247 = vld [vmem:[#allocation11 + $0x198] sm:$0xff]
    %v248 = vld [vmem:[#allocation11 + $0x1a0] sm:$0xff]
    %v249 = vld [vmem:[#allocation11 + $0x1a8] sm:$0xff]
    %v250 = vld [vmem:[#allocation11 + $0x1b0] sm:$0xff]
    %v251 = vld [vmem:[#allocation11 + $0x1b8] sm:$0xff]
    %v252 = vld [vmem:[#allocation11 + $0x1c0] sm:$0xff]
    %v253 = vld [vmem:[#allocation11 + $0x1c8] sm:$0xff]
    %v254 = vld [vmem:[#allocation11 + $0x1d0] sm:$0xff]
    %v255 = vld [vmem:[#allocation11 + $0x1d8] sm:$0xff]
    %v256 = vld [vmem:[#allocation11 + $0x1e0] sm:$0xff]
    %v257 = vld [vmem:[#allocation11 + $0x1e8] sm:$0xff]
    %v258 = vld [vmem:[#allocation11 + $0x1f0] sm:$0xff]
    %v259 = vld [vmem:[#allocation11 + $0x1f8] sm:$0xff]
    %v260 = vld [vmem:[#allocation11 + $0x200] sm:$0xff]
    %v261 = vld [vmem:[#allocation11 + $0x208] sm:$0xff]
    %v262 = vld [vmem:[#allocation11 + $0x210] sm:$0xff]
    %v263 = vld [vmem:[#allocation11 + $0x218] sm:$0xff]
    %v264 = vld [vmem:[#allocation11 + $0x220] sm:$0xff]
    %v265 = vld [vmem:[#allocation11 + $0x228] sm:$0xff]
    %v266 = vld [vmem:[#allocation11 + $0x230] sm:$0xff]
    %v267 = vld [vmem:[#allocation11 + $0x238] sm:$0xff]
    %v268 = vld [vmem:[#allocation11 + $0x240] sm:$0xff]
    %v269 = vld [vmem:[#allocation11 + $0x248] sm:$0xff]
    %v270 = vld [vmem:[#allocation11 + $0x250] sm:$0xff]
    %v271 = vld [vmem:[#allocation11 + $0x258] sm:$0xff]
    %v272 = vld [vmem:[#allocation11 + $0x260] sm:$0xff]
    %v273 = vld [vmem:[#allocation11 + $0x268] sm:$0xff]
    %v274 = vld [vmem:[#allocation11 + $0x270] sm:$0xff]
    %v275 = vld [vmem:[#allocation11 + $0x278] sm:$0xff]
    %v276 = vld [vmem:[#allocation11 + $0x280] sm:$0xff]
    %v277 = vld [vmem:[#allocation11 + $0x288] sm:$0xff]
    %v278 = vld [vmem:[#allocation11 + $0x290] sm:$0xff]
    %v279 = vld [vmem:[#allocation11 + $0x298] sm:$0xff]
    %v280 = vld [vmem:[#allocation11 + $0x2a0] sm:$0xff]
    %v281 = vld [vmem:[#allocation11 + $0x2a8] sm:$0xff]
    %v282 = vld [vmem:[#allocation11 + $0x2b0] sm:$0xff]
    %v283 = vld [vmem:[#allocation11 + $0x2b8] sm:$0xff]
    %v284 = vld [vmem:[#allocation11 + $0x2c0] sm:$0xff]
    %v285 = vld [vmem:[#allocation11 + $0x2c8] sm:$0xff]
    %v286 = vld [vmem:[#allocation11 + $0x2d0] sm:$0xff]
    %v287 = vld [vmem:[#allocation11 + $0x2d8] sm:$0xff]
    %v288 = vld [vmem:[#allocation11 + $0x2e0] sm:$0xff]
    %v289 = vld [vmem:[#allocation11 + $0x2e8] sm:$0xff]
    %v290 = vld [vmem:[#allocation11 + $0x2f0] sm:$0xff]
    %v291 = vld [vmem:[#allocation11 + $0x2f8] sm:$0xff]
    %v292 = vld [vmem:[#allocation11 + $0x300] sm:$0xff]
    %v293 = vld [vmem:[#allocation11 + $0x308] sm:$0xff]
    %v294 = vld [vmem:[#allocation11 + $0x310] sm:$0xff]
    %v295 = vld [vmem:[#allocation11 + $0x318] sm:$0xff]
    %v296 = vld [vmem:[#allocation11 + $0x320] sm:$0xff]
    %v297 = vld [vmem:[#allocation11 + $0x328] sm:$0xff]
    %v298 = vld [vmem:[#allocation11 + $0x330] sm:$0xff]
    %v299 = vld [vmem:[#allocation11 + $0x338] sm:$0xff]
    %v300 = vld [vmem:[#allocation11 + $0x340] sm:$0xff]
    %v301 = vld [vmem:[#allocation11 + $0x348] sm:$0xff]
    %v302 = vld [vmem:[#allocation11 + $0x350] sm:$0xff]
    %v303 = vld [vmem:[#allocation11 + $0x358] sm:$0xff]
    %v304 = vld [vmem:[#allocation11 + $0x360] sm:$0xff]
    %v305 = vld [vmem:[#allocation11 + $0x368] sm:$0xff]
    %v306 = vld [vmem:[#allocation11 + $0x370] sm:$0xff]
    %v307 = vld [vmem:[#allocation11 + $0x378] sm:$0xff]
    %v308 = vld [vmem:[#allocation11 + $0x380] sm:$0xff]
    %v309 = vld [vmem:[#allocation11 + $0x388] sm:$0xff]
    %v310 = vld [vmem:[#allocation11 + $0x390] sm:$0xff]
    %v311 = vld [vmem:[#allocation11 + $0x398] sm:$0xff]
    %v312 = vld [vmem:[#allocation11 + $0x3a0] sm:$0xff]
    %v313 = vld [vmem:[#allocation11 + $0x3a8] sm:$0xff]
    %v314 = vld [vmem:[#allocation11 + $0x3b0] sm:$0xff]
    %v315 = vld [vmem:[#allocation11 + $0x3b8] sm:$0xff]
    %v316 = vld [vmem:[#allocation11 + $0x3c0] sm:$0xff]
    %v317 = vld [vmem:[#allocation11 + $0x3c8] sm:$0xff]
    %v318 = vld [vmem:[#allocation11 + $0x3d0] sm:$0xff]
    %v319 = vld [vmem:[#allocation11 + $0x3d8] sm:$0xff]
    %v320 = vld [vmem:[#allocation11 + $0x3e0] sm:$0xff]
    %v321 = vld [vmem:[#allocation11 + $0x3e8] sm:$0xff]
    %v322 = vld [vmem:[#allocation11 + $0x3f0] sm:$0xff]
    %v323 = vld [vmem:[#allocation11 + $0x3f8] sm:$0xff]
    %v324 = vld [vmem:[#allocation12] sm:$0xf]
    %v326 = vlaneseq
    %v327 = vshrl.u32 %v326, 7
    %v328 = vsub.s32 0, %v327
    %v329 = vrot.slane %v324, %v328
    %v330 = vlaneseq
    %v331 = vshrl.u32 %v330, 7
    %v332 = vsub.s32 1, %v331
    %v333 = vrot.slane %v324, %v332
    %v334 = vlaneseq
    %v335 = vshrl.u32 %v334, 7
    %v336 = vsub.s32 2, %v335
    %v337 = vrot.slane %v324, %v336
    %v338 = vlaneseq
    %v339 = vshrl.u32 %v338, 7
    %v340 = vsub.s32 3, %v339
    %v341 = vrot.slane %v324, %v340
    %346 = vmatprep.subr.mxu0 %v197
    %347 = vmatpush1.msra.mxu0 %v196
    %348 = vmatprep.subr.mxu0 %v201
    %349 = vmatpush1.msra.mxu0 %v200
    %350 = vmatprep.subr.mxu0 %v205
    %351 = vmatpush1.msra.mxu0 %v204
    %352 = vmatprep.subr.mxu0 %v209
    %353 = vmatpush1.msra.mxu0 %v208
    %354 = vmatprep.subr.mxu0 %v213
    %355 = vmatpush1.msra.mxu0 %v212
    %356 = vmatprep.subr.mxu0 %v217
    %357 = vmatpush1.msra.mxu0 %v216
    %358 = vmatprep.subr.mxu0 %v221
    %359 = vmatpush1.msra.mxu0 %v220
    %360 = vmatprep.subr.mxu0 %v225
    %361 = vmatpush1.msra.mxu0 %v224
    %362 = vmatprep.subr.mxu0 %v229
    %363 = vmatpush1.msra.mxu0 %v228
    %364 = vmatprep.subr.mxu0 %v233
    %365 = vmatpush1.msra.mxu0 %v232
    %366 = vmatprep.subr.mxu0 %v237
    %367 = vmatpush1.msra.mxu0 %v236
    %368 = vmatprep.subr.mxu0 %v241
    %369 = vmatpush1.msra.mxu0 %v240
    %370 = vmatprep.subr.mxu0 %v245
    %371 = vmatpush1.msra.mxu0 %v244
    %372 = vmatprep.subr.mxu0 %v249
    %373 = vmatpush1.msra.mxu0 %v248
    %374 = vmatprep.subr.mxu0 %v253
    %375 = vmatpush1.msra.mxu0 %v252
    %376 = vmatprep.subr.mxu0 %v257
    %377 = vmatpush1.msra.mxu0 %v256
    %378 = vmatprep.subr.mxu0 %v261
    %379 = vmatpush1.msra.mxu0 %v260
    %380 = vmatprep.subr.mxu0 %v265
    %381 = vmatpush1.msra.mxu0 %v264
    %382 = vmatprep.subr.mxu0 %v269
    %383 = vmatpush1.msra.mxu0 %v268
    %384 = vmatprep.subr.mxu0 %v273
    %385 = vmatpush1.msra.mxu0 %v272
    %386 = vmatprep.subr.mxu0 %v277
    %387 = vmatpush1.msra.mxu0 %v276
    %388 = vmatprep.subr.mxu0 %v281
    %389 = vmatpush1.msra.mxu0 %v280
    %390 = vmatprep.subr.mxu0 %v285
    %391 = vmatpush1.msra.mxu0 %v284
    %392 = vmatprep.subr.mxu0 %v289
    %393 = vmatpush1.msra.mxu0 %v288
    %394 = vmatprep.subr.mxu0 %v293
    %395 = vmatpush1.msra.mxu0 %v292
    %396 = vmatprep.subr.mxu0 %v297
    %397 = vmatpush1.msra.mxu0 %v296
    %398 = vmatprep.subr.mxu0 %v301
    %399 = vmatpush1.msra.mxu0 %v300
    %400 = vmatprep.subr.mxu0 %v305
    %401 = vmatpush1.msra.mxu0 %v304
    %402 = vmatprep.subr.mxu0 %v309
    %403 = vmatpush1.msra.mxu0 %v308
    %404 = vmatprep.subr.mxu0 %v313
    %405 = vmatpush1.msra.mxu0 %v312
    %406 = vmatprep.subr.mxu0 %v317
    %407 = vmatpush1.msra.mxu0 %v316
    %408 = vmatprep.subr.mxu0 %v321
    %409 = vmatpush1.msra.mxu0 %v320
    %410 = vmatprep.mubr.f32.mxu0 %v193
    %411 = vmatmul.mubr.f32.gmra.mrb[0].mxu0 %v192
    %v412 = vpop.f32.mrb[0].mxu0
    %v413 = vadd.f32 %v329, %v412
    %v414 = vpop.f32.mrb[0].mxu0
    %v415 = vadd.f32 %v333, %v414
    %416 = vmatprep.mubr.f32.mxu0 %v195
    %417 = vmatmul.mubr.f32.gmra.mrb[0].mxu0 %v194
    %v418 = vpop.f32.mrb[0].mxu0
    %v419 = vadd.f32 %v329, %v418
    %v420 = vpop.f32.mrb[0].mxu0
    %v421 = vadd.f32 %v333, %v420
    %422 = vdwg.mxu0
    %423 = vmatprep.subr.mxu0 %v199
    %424 = vmatpush1.msra.mxu0 %v198
    %425 = vmatprep.subr.mxu0 %v203
    %426 = vmatpush1.msra.mxu0 %v202
    %427 = vmatprep.subr.mxu0 %v207
    %428 = vmatpush1.msra.mxu0 %v206
    %429 = vmatprep.subr.mxu0 %v211
    %430 = vmatpush1.msra.mxu0 %v210
    %431 = vmatprep.subr.mxu0 %v215
    %432 = vmatpush1.msra.mxu0 %v214
    %433 = vmatprep.subr.mxu0 %v219
    %434 = vmatpush1.msra.mxu0 %v218
    %435 = vmatprep.subr.mxu0 %v223
    %436 = vmatpush1.msra.mxu0 %v222
    %437 = vmatprep.subr.mxu0 %v227
    %438 = vmatpush1.msra.mxu0 %v226
    %439 = vmatprep.subr.mxu0 %v231
    %440 = vmatpush1.msra.mxu0 %v230
    %441 = vmatprep.subr.mxu0 %v235
    %442 = vmatpush1.msra.mxu0 %v234
    %443 = vmatprep.subr.mxu0 %v239
    %444 = vmatpush1.msra.mxu0 %v238
    %445 = vmatprep.subr.mxu0 %v243
    %446 = vmatpush1.msra.mxu0 %v242
    %447 = vmatprep.subr.mxu0 %v247
    %448 = vmatpush1.msra.mxu0 %v246
    %449 = vmatprep.subr.mxu0 %v251
    %450 = vmatpush1.msra.mxu0 %v250
    %451 = vmatprep.subr.mxu0 %v255
    %452 = vmatpush1.msra.mxu0 %v254
    %453 = vmatprep.subr.mxu0 %v259
    %454 = vmatpush1.msra.mxu0 %v258
    %455 = vmatprep.subr.mxu0 %v263
    %456 = vmatpush1.msra.mxu0 %v262
    %457 = vmatprep.subr.mxu0 %v267
    %458 = vmatpush1.msra.mxu0 %v266
    %459 = vmatprep.subr.mxu0 %v271
    %460 = vmatpush1.msra.mxu0 %v270
    %461 = vmatprep.subr.mxu0 %v275
    %462 = vmatpush1.msra.mxu0 %v274
    %463 = vmatprep.subr.mxu0 %v279
    %464 = vmatpush1.msra.mxu0 %v278
    %465 = vmatprep.subr.mxu0 %v283
    %466 = vmatpush1.msra.mxu0 %v282
    %467 = vmatprep.subr.mxu0 %v287
    %468 = vmatpush1.msra.mxu0 %v286
    %469 = vmatprep.subr.mxu0 %v291
    %470 = vmatpush1.msra.mxu0 %v290
    %471 = vmatprep.subr.mxu0 %v295
    %472 = vmatpush1.msra.mxu0 %v294
    %473 = vmatprep.subr.mxu0 %v299
    %474 = vmatpush1.msra.mxu0 %v298
    %475 = vmatprep.subr.mxu0 %v303
    %476 = vmatpush1.msra.mxu0 %v302
    %477 = vmatprep.subr.mxu0 %v307
    %478 = vmatpush1.msra.mxu0 %v306
    %479 = vmatprep.subr.mxu0 %v311
    %480 = vmatpush1.msra.mxu0 %v310
    %481 = vmatprep.subr.mxu0 %v315
    %482 = vmatpush1.msra.mxu0 %v314
    %483 = vmatprep.subr.mxu0 %v319
    %484 = vmatpush1.msra.mxu0 %v318
    %485 = vmatprep.subr.mxu0 %v323
    %486 = vmatpush1.msra.mxu0 %v322
    %487 = vmatprep.mubr.f32.mxu0 %v193
    %488 = vmatmul.mubr.f32.gmra.mrb[0].mxu0 %v192
    %v489 = vpop.f32.mrb[0].mxu0
    %v490 = vadd.f32 %v337, %v489
    %v491 = vpop.f32.mrb[0].mxu0
    %v492 = vadd.f32 %v341, %v491
    %493 = vmatprep.mubr.f32.mxu0 %v195
    %494 = vmatmul.mubr.f32.gmra.mrb[0].mxu0 %v194
    %v495 = vpop.f32.mrb[0].mxu0
    %v496 = vadd.f32 %v337, %v495
    %v497 = vpop.f32.mrb[0].mxu0
    %v498 = vadd.f32 %v341, %v497
    %499 = vdwg.mxu0
    %500 = vst [vmem:[#allocation14] sm:$0xff] %v413
    %501 = vst [vmem:[#allocation14 + $0x8] sm:$0xff] %v415
    %502 = vst [vmem:[#allocation14 + $0x10] sm:$0xff] %v490
    %503 = vst [vmem:[#allocation14 + $0x18] sm:$0xff] %v492
    %504 = vst [vmem:[#allocation14 + $0x20] sm:$0xff] %v419
    %505 = vst [vmem:[#allocation14 + $0x28] sm:$0xff] %v421
    %506 = vst [vmem:[#allocation14 + $0x30] sm:$0xff] %v496
    %507 = vst [vmem:[#allocation14 + $0x38] sm:$0xff] %v498
    // Predicated region
    $region54: #{tpu_custom_call.1} parent=1 // pred_check
      _
    $region55: #{tpu_custom_call.1} parent=1 // pred_check_branch
      %509 = sbr.rel (0) target = $region57
    $region56: #{tpu_custom_call.1} parent=1 // pred_region
      %s511 = ssub.s32 1024, 1024
      %512 = vsyncadd [#allocation5], %s511
      %s513 = sshll.u32 [#allocation14], 4
      %s514 = int_to_ptr.vmem [resolvable:$true] %s513
      %519 = dma.vmem_to_hbm [thread:$0]  %s514, 1024, %s6, [#allocation5], 512, 512, 32
    $region57: #{tpu_custom_call.1} parent=1 // pred_fallthru
      _
    // Predicated region
    $region58: #{tpu_custom_call.1} parent=1 // pred_check
      _
    $region59: #{tpu_custom_call.1} parent=1 // pred_check_branch
      %521 = sbr.rel (0) target = $region61
    $region60: #{tpu_custom_call.1} parent=1 // pred_region
      %s523 = ssub.s32 512, 512
      %524 = vsyncadd [#allocation16], %s523
      %s525 = sshll.u32 [#allocation15], 4
      %s526 = int_to_ptr.vmem [resolvable:$true] %s525
      %531 = dma.vmem_to_hbm [thread:$0]  %s526, 512, %s7, [#allocation16], 256, 256, 16
    $region61: #{tpu_custom_call.1} parent=1 // pred_fallthru
      _
    // Predicated region
    $region62: #{tpu_custom_call.1} parent=1 // pred_check
      _
    $region63: #{tpu_custom_call.1} parent=1 // pred_check_branch
      %533 = sbr.rel (0) target = $region65
    $region64: #{tpu_custom_call.1} parent=1 // pred_region
      %534 = dma.done [#allocation5], 1024
    $region65: #{tpu_custom_call.1} parent=1 // pred_fallthru
      _
    // Predicated region
    $region66: #{tpu_custom_call.1} parent=1 // pred_check
      _
    $region67: #{tpu_custom_call.1} parent=1 // pred_check_branch
      %536 = sbr.rel (0) target = $region69
    $region68: #{tpu_custom_call.1} parent=1 // pred_region
      %537 = dma.done [#allocation16], 512
    $region69: #{tpu_custom_call.1} parent=1 // pred_fallthru
      _
    %538 = vsyncpa [#allocation4], 1
    %539 = vsyncpa [#allocation7], 1
    %540 = vsyncpa [#allocation10], 1
    %541 = vsyncpa [#allocation13], 1
    %542 = vsyncpa [#allocation5], 1
    %543 = vsyncpa [#allocation16], 1

</llo_original>
